<compile_context>
chip_gen: v6e
topology: v6e:2x2x1
jax: 0.10.0
libtpu: 0.0.40
codegen_flags: <defaults>
</compile_context>

<pallas_src>
import math

import jax
import jax.numpy as jnp
from jax import lax
from jax.experimental import pallas as pl
from jax.experimental.pallas import tpu as pltpu


def _round_up(x, m):
    return (x + m - 1) // m * m


def _gcn_kernel(adj_ref, x_ref, b1_ref, w2t_ref, b2_ref, out_ref, acc_ref):
    k = pl.program_id(1)

    @pl.when(k == 0)
    def _init():
        # Fold the linear1 bias directly into the accumulator (saves a VPU add
        # at finalize; same store cost as zero-init).
        acc_ref[...] = jnp.broadcast_to(b1_ref[...], acc_ref.shape)

    # adj block is A[k-rows, i-cols] with shape (tk, tm); contract on axis 0 of
    # both operands: acc[n, f] += sum_m A[m, n] * X[m, f]  ==  (A.T @ X) tile.
    a = adj_ref[...].astype(jnp.float32)
    acc_ref[...] += lax.dot_general(
        a, x_ref[...],
        dimension_numbers=(((0,), (0,)), ((), ())),
        preferred_element_type=jnp.float32,
    )

    @pl.when(k == pl.num_programs(1) - 1)
    def _finalize():
        h = acc_ref[...]                                      # (tm, Fp), b1 included
        z = jnp.dot(h, w2t_ref[...], preferred_element_type=jnp.float32)
        z = z + b2_ref[...]                                   # (1, Ep) row bias
        out_ref[...] = jnp.maximum(z, 0.0).astype(out_ref.dtype)


def gcn_forward(x, adj, b1, w2, b2, *, block_m=512, block_k=512):
    """ReLU((adj.T @ x + b1[:, None]) @ w2.T + b2).

    x: (N, F) node features, adj: (N, N), b1: (N,), w2: (E, F), b2: (E,).
    """
    N, F = x.shape
    E = w2.shape[0]
    assert block_m % 128 == 0 and block_k % 128 == 0

    Fp = _round_up(F, 128)                  # lane-pad feature dim
    Ep = _round_up(E, 128)                  # lane-dense output dim
    tm = min(block_m, _round_up(N, 128))    # output-row tile
    tk = min(block_k, _round_up(N, 128))    # reduction tile
    Np = _round_up(N, math.lcm(tm, tk))

    # Zero padding in the extra rows/cols does not perturb the valid outputs.
    # bf16 cast of the adjacency is lossless for 0/1 entries and halves the
    # dominant N^2 HBM stream.
    adj_p = jnp.pad(adj.astype(jnp.bfloat16), ((0, Np - N), (0, Np - N)))
    x_p = jnp.pad(x.astype(jnp.float32), ((0, Np - N), (0, Fp - F)))
    b1_p = jnp.pad(b1.astype(jnp.float32).reshape(N, 1), ((0, Np - N), (0, 0)))
    w2t_p = jnp.pad(w2.T.astype(jnp.float32), ((0, Fp - F), (0, Ep - E)))
    b2_p = jnp.pad(b2.astype(jnp.float32).reshape(1, E), ((0, 0), (0, Ep - E)))

    grid = (Np // tm, Np // tk)

    vmem_bytes = (
        2 * tk * tm * 2            # adj double-buffer (bf16)
        + 2 * tk * Fp * 4          # x double-buffer
        + 2 * Fp * Ep * 4          # resident W2^T
        + 2 * tm * 4 + 2 * Ep * 4  # biases
        + 2 * tm * Ep * 4          # output double-buffer
        + tm * Fp * 4              # accumulator scratch
    )
    vmem_limit = int(min(max(2 * vmem_bytes, 16 << 20), 64 << 20))

    cost = pl.CostEstimate(
        flops=2 * Np * Np * Fp + 2 * Np * Fp * Ep,
        transcendentals=0,
        bytes_accessed=Np * Np * 2 + Np * Fp * 4 + Fp * Ep * 4 + Np * Ep * 4,
    )

    out_p = pl.pallas_call(
        _gcn_kernel,
        out_shape=jax.ShapeDtypeStruct((Np, Ep), jnp.float32),
        grid_spec=pltpu.PrefetchScalarGridSpec(
            num_scalar_prefetch=0,
            grid=grid,
            in_specs=[
                pl.BlockSpec((tk, tm), lambda i, k: (k, i)),   # adj (no transpose)
                pl.BlockSpec((tk, Fp), lambda i, k: (k, 0)),   # x
                pl.BlockSpec((tm, 1), lambda i, k: (i, 0)),    # b1 column
                pl.BlockSpec((Fp, Ep), lambda i, k: (0, 0)),   # W2^T resident
                pl.BlockSpec((1, Ep), lambda i, k: (0, 0)),    # b2 row
            ],
            out_specs=pl.BlockSpec((tm, Ep), lambda i, k: (i, 0)),
            scratch_shapes=[pltpu.VMEM((tm, Fp), jnp.float32)],
        ),
        compiler_params=pltpu.CompilerParams(
            dimension_semantics=("parallel", "arbitrary"),
            vmem_limit_bytes=vmem_limit,
        ),
        cost_estimate=cost,
    )(adj_p, x_p, b1_p, w2t_p, b2_p)

    return out_p[:N, :E]


if __name__ == "__main__":
    node_num = 256      # graph nodes
    feat_dim = 16       # per-node input feature dim
    node_emb_dim = 32   # output embedding dim

    key = jax.random.PRNGKey(0)
    k_adj, k_x, k_b1, k_w2, k_b2 = jax.random.split(key, 5)

    # Deterministic synthetic parameters (shapes from the module __init__).
    adj = (jax.random.uniform(k_adj, (node_num, node_num)) > 0.5).astype(jnp.float32)
    x = jax.random.normal(k_x, (node_num, feat_dim), jnp.float32)
    b1 = jax.random.normal(k_b1, (node_num,), jnp.float32) * 0.1           # linear1.bias
    w2 = jax.random.normal(k_w2, (node_emb_dim, feat_dim), jnp.float32) * 0.1  # linear2.weight
    b2 = jax.random.normal(k_b2, (node_emb_dim,), jnp.float32) * 0.1       # linear2.bias

    # Pure-JAX reference of the exact PyTorch semantics.
    ref = jnp.maximum((adj.T @ x + b1[:, None]) @ w2.T + b2, 0.0)

    # Tiled path: 128x128 tiles -> grid (2, 2), exercises the k-accumulator and
    # the parallel row axis.
    out_tiled = jax.block_until_ready(
        gcn_forward(x, adj, b1, w2, b2, block_m=128, block_k=128))
    # Default tiles (clamped to the padded graph size) -> single-tile path.
    out_full = jax.block_until_ready(gcn_forward(x, adj, b1, w2, b2))

    assert out_tiled.shape == (node_num, node_emb_dim)
    assert out_full.shape == (node_num, node_emb_dim)
    assert jnp.allclose(out_tiled, ref, atol=1e-3, rtol=1e-3)
    assert jnp.allclose(out_full, ref, atol=1e-3, rtol=1e-3)

    print("KERNEL_OK")
</pallas_src>

<mosaic_0001>
module attributes {stable_mosaic.version = 11 : i64} {
  func.func @_gcn_kernel(%arg0: i32, %arg1: i32, %arg2: memref<128x128xbf16, #tpu.memory_space<vmem>>, %arg3: memref<128x128xf32, #tpu.memory_space<vmem>>, %arg4: memref<128x1xf32, #tpu.memory_space<vmem>>, %arg5: memref<128x128xf32, #tpu.memory_space<vmem>>, %arg6: memref<1x128xf32, #tpu.memory_space<vmem>>, %arg7: memref<128x128xf32, #tpu.memory_space<vmem>>, %arg8: memref<128x128xf32, #tpu.memory_space<vmem>>) attributes {dimension_semantics = [#tpu.dimension_semantics<parallel>, #tpu.dimension_semantics<arbitrary>], iteration_bounds = array<i64: 2, 2>, scalar_prefetch = 0 : i64, scratch_operands = 1 : i64, tpu.core_type = #tpu.core_type<tc>, window_params = [{transform_indices = @transform_0, window_bounds = array<i64: 128, 128>}, {transform_indices = @transform_1, window_bounds = array<i64: 128, 128>}, {transform_indices = @transform_2, window_bounds = array<i64: 128, 1>}, {pipeline_mode = #tpu.pipeline_mode<synchronous>, transform_indices = @transform_3, window_bounds = array<i64: 128, 128>}, {pipeline_mode = #tpu.pipeline_mode<synchronous>, transform_indices = @transform_4, window_bounds = array<i64: 1, 128>}, {transform_indices = @transform_5, window_bounds = array<i64: 128, 128>}]} {
    %c0_i32 = arith.constant 0 : i32
    %0 = arith.cmpi eq, %arg1, %c0_i32 : i32
    %1 = arith.extui %0 : i1 to i32
    %c0_i32_0 = arith.constant 0 : i32
    %2 = arith.cmpi ne, %1, %c0_i32_0 : i32
    scf.if %2 {
      %c0_9 = arith.constant 0 : index
      %c0_10 = arith.constant 0 : index
      %13 = vector.load %arg4[%c0_9, %c0_10] : memref<128x1xf32, #tpu.memory_space<vmem>>, vector<128x1xf32>
      %14 = vector.shape_cast %13 : vector<128x1xf32> to vector<128x1xf32>
      %15 = vector.broadcast %14 : vector<128x1xf32> to vector<128x128xf32>
      %c0_11 = arith.constant 0 : index
      %c0_12 = arith.constant 0 : index
      %16 = vector.load %arg8[%c0_11, %c0_12] : memref<128x128xf32, #tpu.memory_space<vmem>>, vector<128x128xf32>
      tpu.vector_store %arg8[%c0_11, %c0_12], %15 {strides = array<i32>} : memref<128x128xf32, #tpu.memory_space<vmem>>, vector<128x128xf32>,
    } else {
    }
    %c0 = arith.constant 0 : index
    %c0_1 = arith.constant 0 : index
    %3 = vector.load %arg2[%c0, %c0_1] : memref<128x128xbf16, #tpu.memory_space<vmem>>, vector<128x128xbf16>
    %4 = arith.extf %3 : vector<128x128xbf16> to vector<128x128xf32>
    %c0_2 = arith.constant 0 : index
    %c0_3 = arith.constant 0 : index
    %5 = vector.load %arg8[%c0_2, %c0_3] : memref<128x128xf32, #tpu.memory_space<vmem>>, vector<128x128xf32>
    %c0_4 = arith.constant 0 : index
    %c0_5 = arith.constant 0 : index
    %6 = vector.load %arg3[%c0_4, %c0_5] : memref<128x128xf32, #tpu.memory_space<vmem>>, vector<128x128xf32>
    %cst = arith.constant dense<0.000000e+00> : vector<128x128xf32>
    %7 = tpu.matmul %4, %6, %cst {dimension_numbers = #tpu.dot_dimension_numbers<[0], [0], [1], [1], [0, 1, 1, 1], [], []>} : vector<128x128xf32>, vector<128x128xf32>, vector<128x128xf32> -> vector<128x128xf32>
    %8 = arith.addf %5, %7 : vector<128x128xf32>
    %c0_6 = arith.constant 0 : index
    %c0_7 = arith.constant 0 : index
    %9 = vector.load %arg8[%c0_6, %c0_7] : memref<128x128xf32, #tpu.memory_space<vmem>>, vector<128x128xf32>
    tpu.vector_store %arg8[%c0_6, %c0_7], %8 {strides = array<i32>} : memref<128x128xf32, #tpu.memory_space<vmem>>, vector<128x128xf32>,
    %c1_i32 = arith.constant 1 : i32
    %10 = arith.cmpi eq, %arg1, %c1_i32 : i32
    %11 = arith.extui %10 : i1 to i32
    %c0_i32_8 = arith.constant 0 : i32
    %12 = arith.cmpi ne, %11, %c0_i32_8 : i32
    scf.if %12 {
      %c0_9 = arith.constant 0 : index
      %c0_10 = arith.constant 0 : index
      %13 = vector.load %arg8[%c0_9, %c0_10] : memref<128x128xf32, #tpu.memory_space<vmem>>, vector<128x128xf32>
      %c0_11 = arith.constant 0 : index
      %c0_12 = arith.constant 0 : index
      %14 = vector.load %arg5[%c0_11, %c0_12] : memref<128x128xf32, #tpu.memory_space<vmem>>, vector<128x128xf32>
      %cst_13 = arith.constant dense<0.000000e+00> : vector<128x128xf32>
      %15 = tpu.matmul %13, %14, %cst_13 {dimension_numbers = #tpu.dot_dimension_numbers<[1], [0], [0], [1], [0, 0, 1, 1], [], []>} : vector<128x128xf32>, vector<128x128xf32>, vector<128x128xf32> -> vector<128x128xf32>
      %c0_14 = arith.constant 0 : index
      %c0_15 = arith.constant 0 : index
      %16 = vector.load %arg6[%c0_14, %c0_15] : memref<1x128xf32, #tpu.memory_space<vmem>>, vector<1x128xf32>
      %17 = vector.broadcast %16 : vector<1x128xf32> to vector<128x128xf32>
      %18 = arith.addf %15, %17 : vector<128x128xf32>
      %cst_16 = arith.constant 0.000000e+00 : f32
      %19 = vector.broadcast %cst_16 : f32 to vector<128x128xf32>
      %20 = arith.maximumf %18, %19 : vector<128x128xf32>
      %c0_17 = arith.constant 0 : index
      %c0_18 = arith.constant 0 : index
      %21 = vector.load %arg7[%c0_17, %c0_18] : memref<128x128xf32, #tpu.memory_space<vmem>>, vector<128x128xf32>
      tpu.vector_store %arg7[%c0_17, %c0_18], %20 {strides = array<i32>} : memref<128x128xf32, #tpu.memory_space<vmem>>, vector<128x128xf32>,
    } else {
    }
    return
  }
  func.func @transform_0(%arg0: i32, %arg1: i32) -> (i32, i32) {
    %c0_i32 = arith.constant 0 : i32
    return %arg1, %arg0 : i32, i32
  }
  func.func @transform_1(%arg0: i32, %arg1: i32) -> (i32, i32) {
    %c0_i32 = arith.constant 0 : i32
    %c0_i32_0 = arith.constant 0 : i32
    return %arg1, %c0_i32 : i32, i32
  }
  func.func @transform_2(%arg0: i32, %arg1: i32) -> (i32, i32) {
    %c0_i32 = arith.constant 0 : i32
    %c0_i32_0 = arith.constant 0 : i32
    return %arg0, %c0_i32 : i32, i32
  }
  func.func @transform_3(%arg0: i32, %arg1: i32) -> (i32, i32) {
    %c0_i32 = arith.constant 0 : i32
    %c0_i32_0 = arith.constant 0 : i32
    %c0_i32_1 = arith.constant 0 : i32
    return %c0_i32, %c0_i32_0 : i32, i32
  }
  func.func @transform_4(%arg0: i32, %arg1: i32) -> (i32, i32) {
    %c0_i32 = arith.constant 0 : i32
    %c0_i32_0 = arith.constant 0 : i32
    %c0_i32_1 = arith.constant 0 : i32
    return %c0_i32, %c0_i32_0 : i32, i32
  }
  func.func @transform_5(%arg0: i32, %arg1: i32) -> (i32, i32) {
    %c0_i32 = arith.constant 0 : i32
    %c0_i32_0 = arith.constant 0 : i32
    return %arg0, %c0_i32 : i32, i32
  }
}

</mosaic_0001>

<llo_original>
// kernel: tpu_custom_call.1
$region0: #{tpu_custom_call.1}
  #allocation0 [shape = 'u32[]', space=smem, size = 0x4, offset = 0x4, fixed_abs, tag = 'smem constant byte address 0x4 - core index']
  #allocation1 [shape = 'u32[144,128]{1,0:T(1,128)}', space=vmem, size = 0x12000, scoped, tag = 'internal scratch']
  #allocation2 [shape = 'f32[128,128]{1,0:T(8,128)}', space=vmem, size = 0x10000, scoped, tag = 'scratch operand']
  %s0 = inlined_call_operand.vmem [shape: bf16[256,256], index: 0, kind: input, shape index: {}]
  %s1 = inlined_call_operand.hbm [shape: f32[256,128], index: 1, kind: input, shape index: {}]
  %s2 = inlined_call_operand.vmem [shape: f32[256,1], index: 2, kind: input, shape index: {}]
  %s3 = inlined_call_operand.hbm [shape: f32[128,128], index: 3, kind: input, shape index: {}]
  %s4 = inlined_call_operand.vmem [shape: f32[1,128], index: 4, kind: input, shape index: {}]
  %s5 = inlined_call_operand.hbm [shape: f32[256,128], index: 5, kind: output, shape index: {}]
  %s6 = sld [smem:[#allocation0]]
  $region110: #{tpu_custom_call.1} parent=0
    _
  %s8 = ssub.s32 1, %s6
  %s9 = scalar_select 0, %s8, %s6
  $region1: #{tpu_custom_call.1} parent=0
    #allocation3 [shape = 'u8[65536]{0}', space=vmem, size = 0x10000, scoped, tag = 'input window, operand 0']
    #allocation4 [shape = 'u8[131072]{0}', space=vmem, size = 0x20000, scoped, tag = 'input window, operand 1']
    #allocation5 [shape = 's32[2]{0}', space=sflag, size = 0x8, scoped, tag = 'scoped memory for tpu_custom_call.1']
    #allocation6 [shape = 's32[2]{0}', space=sflag, size = 0x8, scoped, tag = 'scoped memory for tpu_custom_call.1']
    #allocation7 [shape = 'u8[65536]{0}', space=vmem, size = 0x10000, scoped, tag = 'input window, operand 3, single buffered']
    #allocation8 [shape = 's32[1]{0}', space=sflag, size = 0x4, scoped, tag = 'scoped memory for tpu_custom_call.1']
    #allocation9 [shape = 'u8[131072]{0}', space=vmem, size = 0x20000, scoped, tag = 'output window, operand 0']
    %10 = vsyncpa [#allocation5], 0
    %s11 = scalar_lea.sflag [#allocation5], 1
    %12 = vsyncpa %s11, 0
    %13 = vsyncpa [#allocation8], 0
    %14 = vsyncpa [#allocation6], 0
    %s15 = scalar_lea.sflag [#allocation6], 1
    %16 = vsyncpa %s15, 0
    loop: start=0, step=1, limit=6
    $region2: #{tpu_custom_call.1} parent=1 // loop_pre_header
      _
    $region3: #{tpu_custom_call.1} parent=1 // loop_header
      %s18 = sphi 0, %s22
      %p19 = scmp.ge.s32.totalorder %s18, 6
      %s25 = sphi 0, %s37
      %s26 = sphi 0, %s33
      %s27 = sphi 0, %s25
      %s28 = sphi 0, %s26
      %s29 = sphi 0, %s27
      %s30 = sphi 0, %s28
      %s42 = sphi 0, %s44
      %s45 = sphi 0, %s42
      %s46 = sphi 0, %s45
      %s62 = sphi 0, %s46
      %s68 = sphi 0, %s70
      %s71 = sphi 0, %s68
      %s72 = sphi 0, %s71
      %s88 = sphi 0, %s72
      %s94 = sphi 0, %s96
      %s97 = sphi 0, %s94
      %s98 = sphi 0, %s97
      %s114 = sphi 0, %s98
      %s118 = sphi 0, %s118
      %s120 = sphi 0, %s118
      %s121 = sphi 0, %s120
      %s135 = sphi 0, %s121
      %s139 = sphi 0, %s139
      %s141 = sphi 0, %s139
      %s142 = sphi 0, %s141
      %s156 = sphi 0, %s142
      %s162 = sphi 0, %s164
      %s165 = sphi 0, %s162
      %s166 = sphi 0, %s165
      %s182 = sphi 0, %s166
    $region4: #{tpu_custom_call.1} parent=1 // loop_header_branch
      %21 = sbr.rel (%p19) target = $region8
    $region5: #{tpu_custom_call.1} parent=1 // loop_body
      %s23 = ssub.s32 %s18, 1
      %s24 = ssub.s32 %s18, 2
      %s31 = sadd.s32 1, %s26
      %p32 = scmp.ge.s32.totalorder %s31, 2
      %s33 = scalar_select %p32, 0, %s31
      %s34 = sadd.s32 1, %s25
      %s35 = scalar_select %p32, %s34, %s25
      %p36 = scmp.ge.s32.totalorder %s35, 2
      %s37 = scalar_select %p36, 0, %s35
      %s38 = ssub.s32 %s26, %s33
      %s39 = ssub.s32 %s25, %s37
      %s40 = sor.u32 %s38, %s39
      %p41 = scmp.eq.s32.totalorder %s40, 0
      %s43 = sadd.s32 %s42, 1
      %s44 = scalar_select %p41, %s42, %s43
      %p47 = pneg %p41
      %p48 = scmp.eq.s32.totalorder %s18, 3
      %p49 = por %p47, %p48
      %p50 = scmp.ne.s32.totalorder %s42, %s45
      %p51 = scmp.eq.s32.totalorder %s18, 0
      %p52 = por %p50, %p51
      %p53 = scmp.ne.s32.totalorder %s42, %s45
      %p54 = scmp.eq.s32.totalorder %s23, 3
      %p55 = por %p53, %p54
      %p56 = scmp.ne.s32.totalorder %s45, %s46
      %p57 = scmp.eq.s32.totalorder %s23, 0
      %p58 = por %p56, %p57
      %p59 = scmp.ne.s32.totalorder %s45, %s46
      %p60 = scmp.eq.s32.totalorder %s24, 3
      %p61 = por %p59, %p60
      %p63 = scmp.ne.s32.totalorder %s46, %s62
      %p64 = scmp.eq.s32.totalorder %s24, 0
      %p65 = por %p63, %p64
      %s66 = ssub.s32 %s26, %s33
      %p67 = scmp.eq.s32.totalorder %s66, 0
      %s69 = sadd.s32 %s68, 1
      %s70 = scalar_select %p67, %s68, %s69
      %p73 = pneg %p67
      %p74 = scmp.eq.s32.totalorder %s18, 3
      %p75 = por %p73, %p74
      %p76 = scmp.ne.s32.totalorder %s68, %s71
      %p77 = scmp.eq.s32.totalorder %s18, 0
      %p78 = por %p76, %p77
      %p79 = scmp.ne.s32.totalorder %s68, %s71
      %p80 = scmp.eq.s32.totalorder %s23, 3
      %p81 = por %p79, %p80
      %p82 = scmp.ne.s32.totalorder %s71, %s72
      %p83 = scmp.eq.s32.totalorder %s23, 0
      %p84 = por %p82, %p83
      %p85 = scmp.ne.s32.totalorder %s71, %s72
      %p86 = scmp.eq.s32.totalorder %s24, 3
      %p87 = por %p85, %p86
      %p89 = scmp.ne.s32.totalorder %s72, %s88
      %p90 = scmp.eq.s32.totalorder %s24, 0
      %p91 = por %p89, %p90
      %s92 = ssub.s32 %s25, %s37
      %p93 = scmp.eq.s32.totalorder %s92, 0
      %s95 = sadd.s32 %s94, 1
      %s96 = scalar_select %p93, %s94, %s95
      %p99 = pneg %p93
      %p100 = scmp.eq.s32.totalorder %s18, 3
      %p101 = por %p99, %p100
      %p102 = scmp.ne.s32.totalorder %s94, %s97
      %p103 = scmp.eq.s32.totalorder %s18, 0
      %p104 = por %p102, %p103
      %p105 = scmp.ne.s32.totalorder %s94, %s97
      %p106 = scmp.eq.s32.totalorder %s23, 3
      %p107 = por %p105, %p106
      %p108 = scmp.ne.s32.totalorder %s97, %s98
      %p109 = scmp.eq.s32.totalorder %s23, 0
      %p110 = por %p108, %p109
      %p111 = scmp.ne.s32.totalorder %s97, %s98
      %p112 = scmp.eq.s32.totalorder %s24, 3
      %p113 = por %p111, %p112
      %p115 = scmp.ne.s32.totalorder %s98, %s114
      %p116 = scmp.eq.s32.totalorder %s24, 0
      %p117 = por %p115, %p116
      %s119 = sadd.s32 %s118, 1
      %p122 = scmp.eq.s32.totalorder %s18, 3
      %p123 = scmp.ne.s32.totalorder %s118, %s120
      %p124 = scmp.eq.s32.totalorder %s18, 0
      %p125 = por %p123, %p124
      %p126 = scmp.ne.s32.totalorder %s118, %s120
      %p127 = scmp.eq.s32.totalorder %s23, 3
      %p128 = por %p126, %p127
      %p129 = scmp.ne.s32.totalorder %s120, %s121
      %p130 = scmp.eq.s32.totalorder %s23, 0
      %p131 = por %p129, %p130
      %p132 = scmp.ne.s32.totalorder %s120, %s121
      %p133 = scmp.eq.s32.totalorder %s24, 3
      %p134 = por %p132, %p133
      %p136 = scmp.ne.s32.totalorder %s121, %s135
      %p137 = scmp.eq.s32.totalorder %s24, 0
      %p138 = por %p136, %p137
      %s140 = sadd.s32 %s139, 1
      %p143 = scmp.eq.s32.totalorder %s18, 3
      %p144 = scmp.ne.s32.totalorder %s139, %s141
      %p145 = scmp.eq.s32.totalorder %s18, 0
      %p146 = por %p144, %p145
      %p147 = scmp.ne.s32.totalorder %s139, %s141
      %p148 = scmp.eq.s32.totalorder %s23, 3
      %p149 = por %p147, %p148
      %p150 = scmp.ne.s32.totalorder %s141, %s142
      %p151 = scmp.eq.s32.totalorder %s23, 0
      %p152 = por %p150, %p151
      %p153 = scmp.ne.s32.totalorder %s141, %s142
      %p154 = scmp.eq.s32.totalorder %s24, 3
      %p155 = por %p153, %p154
      %p157 = scmp.ne.s32.totalorder %s142, %s156
      %p158 = scmp.eq.s32.totalorder %s24, 0
      %p159 = por %p157, %p158
      %s160 = ssub.s32 %s25, %s37
      %p161 = scmp.eq.s32.totalorder %s160, 0
      %s163 = sadd.s32 %s162, 1
      %s164 = scalar_select %p161, %s162, %s163
      %p167 = pneg %p161
      %p168 = scmp.eq.s32.totalorder %s18, 3
      %p169 = por %p167, %p168
      %p170 = scmp.ne.s32.totalorder %s162, %s165
      %p171 = scmp.eq.s32.totalorder %s18, 0
      %p172 = por %p170, %p171
      %p173 = scmp.ne.s32.totalorder %s162, %s165
      %p174 = scmp.eq.s32.totalorder %s23, 3
      %p175 = por %p173, %p174
      %p176 = scmp.ne.s32.totalorder %s165, %s166
      %p177 = scmp.eq.s32.totalorder %s23, 0
      %p178 = por %p176, %p177
      %p179 = scmp.ne.s32.totalorder %s165, %s166
      %p180 = scmp.eq.s32.totalorder %s24, 3
      %p181 = por %p179, %p180
      %p183 = scmp.ne.s32.totalorder %s166, %s182
      %p184 = scmp.eq.s32.totalorder %s24, 0
      %p185 = por %p183, %p184
      %p186 = scmp.le.s32.totalorder 1, %s18
      %p187 = scmp.lt.s32.totalorder %s18, 5
      %p188 = pnand %p186, %p187
      %p189 = pneg %p188
      // Predicated region
      $region9: #{tpu_custom_call.1} parent=5 // pred_check
        _
      $region10: #{tpu_custom_call.1} parent=5 // pred_check_branch
        %191 = sbr.rel (%p188) target = $region12
      $region11: #{tpu_custom_call.1} parent=5 // pred_region
        %s192 = ssub.s32 %s18, 1
        // Predicated region
        $region13: #{tpu_custom_call.1} parent=11 // pred_check
          %p193 = pneg %p131
        $region14: #{tpu_custom_call.1} parent=11 // pred_check_branch
          %195 = sbr.rel (%p193) target = $region16
        $region15: #{tpu_custom_call.1} parent=11 // pred_region
          %s197 = ssub.s32 2048, 2048
          %198 = vsyncadd [#allocation8], %s197
          %s199 = sshll.u32 [#allocation7], 4
          %s200 = int_to_ptr.vmem [resolvable:$true] %s199
          %205 = dma.hbm_to_vmem [thread:$0]  %s3, 2048, %s200, [#allocation8], 128, 128, 8
        $region16: #{tpu_custom_call.1} parent=11 // pred_fallthru
          _
        // Predicated region
        $region17: #{tpu_custom_call.1} parent=11 // pred_check
          %p206 = pneg %p152
        $region18: #{tpu_custom_call.1} parent=11 // pred_check_branch
          %208 = sbr.rel (%p206) target = $region20
        $region19: #{tpu_custom_call.1} parent=11 // pred_region
          _
        $region20: #{tpu_custom_call.1} parent=11 // pred_fallthru
          _
      $region12: #{tpu_custom_call.1} parent=5 // pred_fallthru
        _
      %p209 = scmp.lt.s32.totalorder %s18, 4
      // Predicated region
      $region21: #{tpu_custom_call.1} parent=5 // pred_check
        %p210 = pneg %p209
      $region22: #{tpu_custom_call.1} parent=5 // pred_check_branch
        %212 = sbr.rel (%p210) target = $region24
      $region23: #{tpu_custom_call.1} parent=5 // pred_region
        // Predicated region
        $region25: #{tpu_custom_call.1} parent=23 // pred_check
          %p213 = pneg %p52
        $region26: #{tpu_custom_call.1} parent=23 // pred_check_branch
          %215 = sbr.rel (%p213) target = $region28
        $region27: #{tpu_custom_call.1} parent=23 // pred_region
          %s216 = sand.u32 %s42, 1
          %s217 = sand.u32 %s42, 1
          %s218 = smul.addr %s217, 64
          %s219 = scalar_lea.vmem [#allocation3], %s218
          %s220 = smul.u32 16, %s26
          %s221 = smul.addr %s220, 2
          %s222 = sadd.s32 %s25, %s221
          %s223 = smul.addr %s222, 4
          %s224 = scalar_lea.vmem %s0, %s223
          // Predicated region
          $region29: #{tpu_custom_call.1} parent=27 // pred_check
            _
          $region30: #{tpu_custom_call.1} parent=27 // pred_check_branch
            %226 = sbr.rel (0) target = $region32
          $region31: #{tpu_custom_call.1} parent=27 // pred_region
            // Predicated region
            $region33: #{tpu_custom_call.1} parent=31 // pred_check
              _
            $region34: #{tpu_custom_call.1} parent=31 // pred_check_branch
              %228 = sbr.rel target = $region36
            $region35: #{tpu_custom_call.1} parent=31 // pred_region
              // Predicated region
              $region48: #{tpu_custom_call.1} parent=35 // pred_check
                _
              $region49: #{tpu_custom_call.1} parent=35 // pred_check_branch
                %274 = sbr.rel (0) target = $region51
              $region50: #{tpu_custom_call.1} parent=35 // pred_region
                loop: start=0, step=1, limit=1
                $region52: #{tpu_custom_call.1} parent=50 // loop_pre_header
                  _
                $region53: #{tpu_custom_call.1} parent=50 // loop_header
                  %s276 = sphi 0, %s280
                  %p277 = scmp.ge.s32.totalorder %s276, 1
                  %s281 = sphi %s224, %s224
                  %s282 = sphi %s219, %s219
                $region54: #{tpu_custom_call.1} parent=50 // loop_header_branch
                  %279 = sbr.rel (%p277) target = $region58
                $region55: #{tpu_custom_call.1} parent=50 // loop_body
                  _
                $region56: #{tpu_custom_call.1} parent=50 // loop_footer
                  %s280 = sadd.s32 1, %s276
                $region57: #{tpu_custom_call.1} parent=50 // loop_footer_branch
                  %275 = sbr.rel target = $region53
                $region58: #{tpu_custom_call.1} parent=50 // loop_exit
                  _
                %s284 = ssub.s32 16, 1
                loop: start=0, step=1, limit=1
                $region59: #{tpu_custom_call.1} parent=50 // loop_pre_header
                  _
                $region60: #{tpu_custom_call.1} parent=50 // loop_header
                  %s286 = sphi 0, %s290
                  %p287 = scmp.ge.s32.totalorder %s286, 1
                  %s291 = sphi %s224, %s224
                  %s292 = sphi %s219, %s219
                $region61: #{tpu_custom_call.1} parent=50 // loop_header_branch
                  %289 = sbr.rel (%p287) target = $region65
                $region62: #{tpu_custom_call.1} parent=50 // loop_body
                  %v293 = vld [vmem:[%s291] sm:%s284]
                  %294 = vst [vmem:[%s292] sm:%s284] %v293
                  %v295 = vld [vmem:[%s291 + $0x8] sm:%s284]
                  %296 = vst [vmem:[%s292 + $0x4] sm:%s284] %v295
                  %v297 = vld [vmem:[%s291 + $0x10] sm:%s284]
                  %298 = vst [vmem:[%s292 + $0x8] sm:%s284] %v297
                  %v299 = vld [vmem:[%s291 + $0x18] sm:%s284]
                  %300 = vst [vmem:[%s292 + $0xc] sm:%s284] %v299
                  %v301 = vld [vmem:[%s291 + $0x20] sm:%s284]
                  %302 = vst [vmem:[%s292 + $0x10] sm:%s284] %v301
                  %v303 = vld [vmem:[%s291 + $0x28] sm:%s284]
                  %304 = vst [vmem:[%s292 + $0x14] sm:%s284] %v303
                  %v305 = vld [vmem:[%s291 + $0x30] sm:%s284]
                  %306 = vst [vmem:[%s292 + $0x18] sm:%s284] %v305
                  %v307 = vld [vmem:[%s291 + $0x38] sm:%s284]
                  %308 = vst [vmem:[%s292 + $0x1c] sm:%s284] %v307
                  %v309 = vld [vmem:[%s291 + $0x40] sm:%s284]
                  %310 = vst [vmem:[%s292 + $0x20] sm:%s284] %v309
                  %v311 = vld [vmem:[%s291 + $0x48] sm:%s284]
                  %312 = vst [vmem:[%s292 + $0x24] sm:%s284] %v311
                  %v313 = vld [vmem:[%s291 + $0x50] sm:%s284]
                  %314 = vst [vmem:[%s292 + $0x28] sm:%s284] %v313
                  %v315 = vld [vmem:[%s291 + $0x58] sm:%s284]
                  %316 = vst [vmem:[%s292 + $0x2c] sm:%s284] %v315
                  %v317 = vld [vmem:[%s291 + $0x60] sm:%s284]
                  %318 = vst [vmem:[%s292 + $0x30] sm:%s284] %v317
                  %v319 = vld [vmem:[%s291 + $0x68] sm:%s284]
                  %320 = vst [vmem:[%s292 + $0x34] sm:%s284] %v319
                  %v321 = vld [vmem:[%s291 + $0x70] sm:%s284]
                  %322 = vst [vmem:[%s292 + $0x38] sm:%s284] %v321
                  %v323 = vld [vmem:[%s291 + $0x78] sm:%s284]
                  %324 = vst [vmem:[%s292 + $0x3c] sm:%s284] %v323
                $region63: #{tpu_custom_call.1} parent=50 // loop_footer
                  %s290 = sadd.s32 1, %s286
                $region64: #{tpu_custom_call.1} parent=50 // loop_footer_branch
                  %285 = sbr.rel target = $region60
                $region65: #{tpu_custom_call.1} parent=50 // loop_exit
                  _
              $region51: #{tpu_custom_call.1} parent=35 // pred_fallthru
                _
            $region36: #{tpu_custom_call.1} parent=31 // pred_fallthru
              _
            // Predicated region
            $region37: #{tpu_custom_call.1} parent=31 // pred_check
              _
            $region38: #{tpu_custom_call.1} parent=31 // pred_check_branch
              %230 = sbr.rel (0) target = $region40
            $region39: #{tpu_custom_call.1} parent=31 // pred_region
              %s232 = ssub.s32 16, 1
              loop: start=0, step=1, limit=1
              $region41: #{tpu_custom_call.1} parent=39 // loop_pre_header
                _
              $region42: #{tpu_custom_call.1} parent=39 // loop_header
                %s234 = sphi 0, %s238
                %p235 = scmp.ge.s32.totalorder %s234, 1
                %s239 = sphi %s224, %s224
                %s240 = sphi %s219, %s219
              $region43: #{tpu_custom_call.1} parent=39 // loop_header_branch
                %237 = sbr.rel (%p235) target = $region47
              $region44: #{tpu_custom_call.1} parent=39 // loop_body
                %v241 = vld [vmem:[%s239] sm:%s232]
                %242 = vst [vmem:[%s240] sm:%s232] %v241
                %v243 = vld [vmem:[%s239 + $0x8] sm:%s232]
                %244 = vst [vmem:[%s240 + $0x4] sm:%s232] %v243
                %v245 = vld [vmem:[%s239 + $0x10] sm:%s232]
                %246 = vst [vmem:[%s240 + $0x8] sm:%s232] %v245
                %v247 = vld [vmem:[%s239 + $0x18] sm:%s232]
                %248 = vst [vmem:[%s240 + $0xc] sm:%s232] %v247
                %v249 = vld [vmem:[%s239 + $0x20] sm:%s232]
                %250 = vst [vmem:[%s240 + $0x10] sm:%s232] %v249
                %v251 = vld [vmem:[%s239 + $0x28] sm:%s232]
                %252 = vst [vmem:[%s240 + $0x14] sm:%s232] %v251
                %v253 = vld [vmem:[%s239 + $0x30] sm:%s232]
                %254 = vst [vmem:[%s240 + $0x18] sm:%s232] %v253
                %v255 = vld [vmem:[%s239 + $0x38] sm:%s232]
                %256 = vst [vmem:[%s240 + $0x1c] sm:%s232] %v255
                %v257 = vld [vmem:[%s239 + $0x40] sm:%s232]
                %258 = vst [vmem:[%s240 + $0x20] sm:%s232] %v257
                %v259 = vld [vmem:[%s239 + $0x48] sm:%s232]
                %260 = vst [vmem:[%s240 + $0x24] sm:%s232] %v259
                %v261 = vld [vmem:[%s239 + $0x50] sm:%s232]
                %262 = vst [vmem:[%s240 + $0x28] sm:%s232] %v261
                %v263 = vld [vmem:[%s239 + $0x58] sm:%s232]
                %264 = vst [vmem:[%s240 + $0x2c] sm:%s232] %v263
                %v265 = vld [vmem:[%s239 + $0x60] sm:%s232]
                %266 = vst [vmem:[%s240 + $0x30] sm:%s232] %v265
                %v267 = vld [vmem:[%s239 + $0x68] sm:%s232]
                %268 = vst [vmem:[%s240 + $0x34] sm:%s232] %v267
                %v269 = vld [vmem:[%s239 + $0x70] sm:%s232]
                %270 = vst [vmem:[%s240 + $0x38] sm:%s232] %v269
                %v271 = vld [vmem:[%s239 + $0x78] sm:%s232]
                %272 = vst [vmem:[%s240 + $0x3c] sm:%s232] %v271
              $region45: #{tpu_custom_call.1} parent=39 // loop_footer
                %s238 = sadd.s32 1, %s234
              $region46: #{tpu_custom_call.1} parent=39 // loop_footer_branch
                %233 = sbr.rel target = $region42
              $region47: #{tpu_custom_call.1} parent=39 // loop_exit
                _
            $region40: #{tpu_custom_call.1} parent=31 // pred_fallthru
              _
          $region32: #{tpu_custom_call.1} parent=27 // pred_fallthru
            _
          %325 = vnop
        $region28: #{tpu_custom_call.1} parent=23 // pred_fallthru
          _
        // Predicated region
        $region66: #{tpu_custom_call.1} parent=23 // pred_check
          %p326 = pneg %p78
        $region67: #{tpu_custom_call.1} parent=23 // pred_check_branch
          %328 = sbr.rel (%p326) target = $region69
        $region68: #{tpu_custom_call.1} parent=23 // pred_region
          %s329 = sand.u32 %s68, 1
          %s330 = scalar_lea.sflag [#allocation5], %s329
          %s331 = sand.u32 %s68, 1
          %s332 = smul.addr %s331, 128
          %s333 = scalar_lea.vmem [#allocation4], %s332
          %s334 = smul.u32 16, %s26
          %s336 = ssub.s32 2048, 2048
          %337 = vsyncadd %s330, %s336
          %s338 = smul.addr %s334, 128
          %s339 = scalar_lea.hbm %s1, %s338
          %s340 = sshll.u32 %s333, 4
          %s341 = int_to_ptr.vmem [resolvable:$true] %s340
          %346 = dma.hbm_to_vmem [thread:$0]  %s339, 2048, %s341, %s330, 128, 128, 8
        $region69: #{tpu_custom_call.1} parent=23 // pred_fallthru
          _
        // Predicated region
        $region70: #{tpu_custom_call.1} parent=23 // pred_check
          %p347 = pneg %p104
        $region71: #{tpu_custom_call.1} parent=23 // pred_check_branch
          %349 = sbr.rel (%p347) target = $region73
        $region72: #{tpu_custom_call.1} parent=23 // pred_region
          %s350 = smul.u32 16, %s25
          %p351 = scmp.lt.s32.totalorder %s350, 31
          %s352 = scalar_select %p351, %s350, 31
          %s353 = smul.addr %s352, 8
          %s354 = scalar_lea.vmem %s2, %s353
          %s355 = smul.u32 16, %s25
        $region73: #{tpu_custom_call.1} parent=23 // pred_fallthru
          _
      $region24: #{tpu_custom_call.1} parent=5 // pred_fallthru
        _
      %p356 = scmp.le.s32.totalorder 1, %s18
      %p357 = scmp.lt.s32.totalorder %s18, 5
      %p358 = pnand %p356, %p357
      %p359 = pneg %p358
      // Predicated region
      $region74: #{tpu_custom_call.1} parent=5 // pred_check
        _
      $region75: #{tpu_custom_call.1} parent=5 // pred_check_branch
        %361 = sbr.rel (%p358) target = $region77
      $region76: #{tpu_custom_call.1} parent=5 // pred_region
        %s362 = ssub.s32 %s18, 1
        %s363 = sand.u32 %s45, 1
        %s364 = sand.u32 %s45, 1
        %s365 = smul.addr %s364, 64
        %s366 = scalar_lea.vmem [#allocation3], %s365
        // Predicated region
        $region78: #{tpu_custom_call.1} parent=76 // pred_check
          %p367 = pneg %p58
        $region79: #{tpu_custom_call.1} parent=76 // pred_check_branch
          %369 = sbr.rel (%p367) target = $region81
        $region80: #{tpu_custom_call.1} parent=76 // pred_region
          _
        $region81: #{tpu_custom_call.1} parent=76 // pred_fallthru
          _
        %s370 = sand.u32 %s71, 1
        %s371 = scalar_lea.sflag [#allocation5], %s370
        %s372 = sand.u32 %s71, 1
        %s373 = smul.addr %s372, 128
        %s374 = scalar_lea.vmem [#allocation4], %s373
        // Predicated region
        $region82: #{tpu_custom_call.1} parent=76 // pred_check
          %p375 = pneg %p84
        $region83: #{tpu_custom_call.1} parent=76 // pred_check_branch
          %377 = sbr.rel (%p375) target = $region85
        $region84: #{tpu_custom_call.1} parent=76 // pred_region
          %378 = dma.done %s371, 2048
        $region85: #{tpu_custom_call.1} parent=76 // pred_fallthru
          _
        // Predicated region
        $region86: #{tpu_custom_call.1} parent=76 // pred_check
          %p379 = pneg %p131
        $region87: #{tpu_custom_call.1} parent=76 // pred_check_branch
          %381 = sbr.rel (%p379) target = $region89
        $region88: #{tpu_custom_call.1} parent=76 // pred_region
          %382 = dma.done [#allocation8], 2048
        $region89: #{tpu_custom_call.1} parent=76 // pred_fallthru
          _
        %s383 = sand.u32 %s45, 1
        %s384 = sand.u32 %s45, 1
        %s385 = smul.addr %s384, 64
        %s386 = scalar_lea.vmem [#allocation3], %s385
        %p387 = pneg %p58
        %p388 = pneg %p55
        %s389 = sand.u32 %s71, 1
        %s390 = scalar_lea.sflag [#allocation5], %s389
        %s391 = sand.u32 %s71, 1
        %s392 = smul.addr %s391, 128
        %s393 = scalar_lea.vmem [#allocation4], %s392
        %p394 = pneg %p84
        %p395 = pneg %p81
        %s396 = smul.u32 16, %s27
        %p397 = scmp.lt.s32.totalorder %s396, 31
        %s398 = scalar_select %p397, %s396, 31
        %s399 = smul.addr %s398, 8
        %s400 = scalar_lea.vmem %s2, %s399
        %p401 = pneg %p110
        %p402 = pneg %p107
        %p403 = pneg %p131
        %p404 = pneg %p128
        %p405 = pneg %p152
        %p406 = pneg %p149
        %p407 = pneg %p178
        %p408 = pneg %p175
        %s409 = sand.u32 %s165, 1
        %s410 = scalar_lea.sflag [#allocation6], %s409
        %s411 = sand.u32 %s165, 1
        %s412 = smul.addr %s411, 128
        %s413 = scalar_lea.vmem [#allocation9], %s412
        %s414 = smul.u32 16, %s28
        %s415 = smul.u32 16, %s28
        %s416 = smul.u32 16, %s27
        %p417 = scmp.lt.s32.totalorder %s416, 31
        %s418 = scalar_select %p417, %s416, 31
        %s419 = smul.addr %s418, 8
        %s420 = scalar_lea.vmem %s2, %s419
        %s421 = smul.u32 16, %s27
        %s422 = smul.u32 16, %s27
        %p423 = scmp.eq.s32.totalorder %s28, 0
        // Predicated region
        $region90: #{tpu_custom_call.1} parent=76 // pred_check
          %p424 = pneg %p423
        $region91: #{tpu_custom_call.1} parent=76 // pred_check_branch
          %426 = sbr.rel (%p424) target = $region93
        $region92: #{tpu_custom_call.1} parent=76 // pred_region
          %v427 = vld [vmem:[%s420] sm:$0xff]
          %v428 = vld [vmem:[%s420 + $0x8] sm:$0xff]
          %v429 = vld [vmem:[%s420 + $0x10] sm:$0xff]
          %v430 = vld [vmem:[%s420 + $0x18] sm:$0xff]
          %v431 = vld [vmem:[%s420 + $0x20] sm:$0xff]
          %v432 = vld [vmem:[%s420 + $0x28] sm:$0xff]
          %v433 = vld [vmem:[%s420 + $0x30] sm:$0xff]
          %v434 = vld [vmem:[%s420 + $0x38] sm:$0xff]
          %v435 = vld [vmem:[%s420 + $0x40] sm:$0xff]
          %v436 = vld [vmem:[%s420 + $0x48] sm:$0xff]
          %v437 = vld [vmem:[%s420 + $0x50] sm:$0xff]
          %v438 = vld [vmem:[%s420 + $0x58] sm:$0xff]
          %v439 = vld [vmem:[%s420 + $0x60] sm:$0xff]
          %v440 = vld [vmem:[%s420 + $0x68] sm:$0xff]
          %v441 = vld [vmem:[%s420 + $0x70] sm:$0xff]
          %v442 = vld [vmem:[%s420 + $0x78] sm:$0xff]
          %444 = vset.pattern.permute.xlu0 0
          %445 = vperm.xlu0 %444, %v427
          %v446 = vpop.permute.xlu0 %445
          %449 = vset.pattern.permute.xlu0 0
          %450 = vperm.xlu0 %449, %v428
          %v451 = vpop.permute.xlu0 %450
          %454 = vset.pattern.permute.xlu0 0
          %455 = vperm.xlu0 %454, %v429
          %v456 = vpop.permute.xlu0 %455
          %459 = vset.pattern.permute.xlu0 0
          %460 = vperm.xlu0 %459, %v430
          %v461 = vpop.permute.xlu0 %460
          %464 = vset.pattern.permute.xlu0 0
          %465 = vperm.xlu0 %464, %v431
          %v466 = vpop.permute.xlu0 %465
          %469 = vset.pattern.permute.xlu0 0
          %470 = vperm.xlu0 %469, %v432
          %v471 = vpop.permute.xlu0 %470
          %474 = vset.pattern.permute.xlu0 0
          %475 = vperm.xlu0 %474, %v433
          %v476 = vpop.permute.xlu0 %475
          %479 = vset.pattern.permute.xlu0 0
          %480 = vperm.xlu0 %479, %v434
          %v481 = vpop.permute.xlu0 %480
          %484 = vset.pattern.permute.xlu0 0
          %485 = vperm.xlu0 %484, %v435
          %v486 = vpop.permute.xlu0 %485
          %489 = vset.pattern.permute.xlu0 0
          %490 = vperm.xlu0 %489, %v436
          %v491 = vpop.permute.xlu0 %490
          %494 = vset.pattern.permute.xlu0 0
          %495 = vperm.xlu0 %494, %v437
          %v496 = vpop.permute.xlu0 %495
          %499 = vset.pattern.permute.xlu0 0
          %500 = vperm.xlu0 %499, %v438
          %v501 = vpop.permute.xlu0 %500
          %504 = vset.pattern.permute.xlu0 0
          %505 = vperm.xlu0 %504, %v439
          %v506 = vpop.permute.xlu0 %505
          %509 = vset.pattern.permute.xlu0 0
          %510 = vperm.xlu0 %509, %v440
          %v511 = vpop.permute.xlu0 %510
          %514 = vset.pattern.permute.xlu0 0
          %515 = vperm.xlu0 %514, %v441
          %v516 = vpop.permute.xlu0 %515
          %519 = vset.pattern.permute.xlu0 0
          %520 = vperm.xlu0 %519, %v442
          %v521 = vpop.permute.xlu0 %520
          %523 = vst [vmem:[#allocation2] sm:$0xff] %v446
          %524 = vst [vmem:[#allocation2 + $0x8] sm:$0xff] %v451
          %525 = vst [vmem:[#allocation2 + $0x10] sm:$0xff] %v456
          %526 = vst [vmem:[#allocation2 + $0x18] sm:$0xff] %v461
          %527 = vst [vmem:[#allocation2 + $0x20] sm:$0xff] %v466
          %528 = vst [vmem:[#allocation2 + $0x28] sm:$0xff] %v471
          %529 = vst [vmem:[#allocation2 + $0x30] sm:$0xff] %v476
          %530 = vst [vmem:[#allocation2 + $0x38] sm:$0xff] %v481
          %531 = vst [vmem:[#allocation2 + $0x40] sm:$0xff] %v486
          %532 = vst [vmem:[#allocation2 + $0x48] sm:$0xff] %v491
          %533 = vst [vmem:[#allocation2 + $0x50] sm:$0xff] %v496
          %534 = vst [vmem:[#allocation2 + $0x58] sm:$0xff] %v501
          %535 = vst [vmem:[#allocation2 + $0x60] sm:$0xff] %v506
          %536 = vst [vmem:[#allocation2 + $0x68] sm:$0xff] %v511
          %537 = vst [vmem:[#allocation2 + $0x70] sm:$0xff] %v516
          %538 = vst [vmem:[#allocation2 + $0x78] sm:$0xff] %v521
        $region93: #{tpu_custom_call.1} parent=76 // pred_fallthru
          _
        %v539 = vld [vmem:[%s366] sm:$0xf]
        %v540 = vld [vmem:[%s366 + $0x4] sm:$0xf]
        %v541 = vld [vmem:[%s366 + $0x8] sm:$0xf]
        %v542 = vld [vmem:[%s366 + $0xc] sm:$0xf]
        %v543 = vld [vmem:[%s366 + $0x10] sm:$0xf]
        %v544 = vld [vmem:[%s366 + $0x14] sm:$0xf]
        %v545 = vld [vmem:[%s366 + $0x18] sm:$0xf]
        %v546 = vld [vmem:[%s366 + $0x1c] sm:$0xf]
        %v547 = vld [vmem:[%s366 + $0x20] sm:$0xf]
        %v548 = vld [vmem:[%s366 + $0x24] sm:$0xf]
        %v549 = vld [vmem:[%s366 + $0x28] sm:$0xf]
        %v550 = vld [vmem:[%s366 + $0x2c] sm:$0xf]
        %v551 = vld [vmem:[%s366 + $0x30] sm:$0xf]
        %v552 = vld [vmem:[%s366 + $0x34] sm:$0xf]
        %v553 = vld [vmem:[%s366 + $0x38] sm:$0xf]
        %v554 = vld [vmem:[%s366 + $0x3c] sm:$0xf]
        %v555 = vunpack.c.l.bf16 %v539
        %v556 = vunpack.c.l.bf16 %v540
        %v557 = vunpack.c.l.bf16 %v541
        %v558 = vunpack.c.l.bf16 %v542
        %v559 = vunpack.c.l.bf16 %v543
        %v560 = vunpack.c.l.bf16 %v544
        %v561 = vunpack.c.l.bf16 %v545
        %v562 = vunpack.c.l.bf16 %v546
        %v563 = vunpack.c.l.bf16 %v547
        %v564 = vunpack.c.l.bf16 %v548
        %v565 = vunpack.c.l.bf16 %v549
        %v566 = vunpack.c.l.bf16 %v550
        %v567 = vunpack.c.l.bf16 %v551
        %v568 = vunpack.c.l.bf16 %v552
        %v569 = vunpack.c.l.bf16 %v553
        %v570 = vunpack.c.l.bf16 %v554
        %v571 = vld [vmem:[#allocation2] sm:$0xff]
        %v572 = vld [vmem:[#allocation2 + $0x8] sm:$0xff]
        %v573 = vld [vmem:[#allocation2 + $0x10] sm:$0xff]
        %v574 = vld [vmem:[#allocation2 + $0x18] sm:$0xff]
        %v575 = vld [vmem:[#allocation2 + $0x20] sm:$0xff]
        %v576 = vld [vmem:[#allocation2 + $0x28] sm:$0xff]
        %v577 = vld [vmem:[#allocation2 + $0x30] sm:$0xff]
        %v578 = vld [vmem:[#allocation2 + $0x38] sm:$0xff]
        %v579 = vld [vmem:[#allocation2 + $0x40] sm:$0xff]
        %v580 = vld [vmem:[#allocation2 + $0x48] sm:$0xff]
        %v581 = vld [vmem:[#allocation2 + $0x50] sm:$0xff]
        %v582 = vld [vmem:[#allocation2 + $0x58] sm:$0xff]
        %v583 = vld [vmem:[#allocation2 + $0x60] sm:$0xff]
        %v584 = vld [vmem:[#allocation2 + $0x68] sm:$0xff]
        %v585 = vld [vmem:[#allocation2 + $0x70] sm:$0xff]
        %v586 = vld [vmem:[#allocation2 + $0x78] sm:$0xff]
        %v587 = vld [vmem:[%s374] sm:$0xff]
        %v588 = vld [vmem:[%s374 + $0x8] sm:$0xff]
        %v589 = vld [vmem:[%s374 + $0x10] sm:$0xff]
        %v590 = vld [vmem:[%s374 + $0x18] sm:$0xff]
        %v591 = vld [vmem:[%s374 + $0x20] sm:$0xff]
        %v592 = vld [vmem:[%s374 + $0x28] sm:$0xff]
        %v593 = vld [vmem:[%s374 + $0x30] sm:$0xff]
        %v594 = vld [vmem:[%s374 + $0x38] sm:$0xff]
        %v595 = vld [vmem:[%s374 + $0x40] sm:$0xff]
        %v596 = vld [vmem:[%s374 + $0x48] sm:$0xff]
        %v597 = vld [vmem:[%s374 + $0x50] sm:$0xff]
        %v598 = vld [vmem:[%s374 + $0x58] sm:$0xff]
        %v599 = vld [vmem:[%s374 + $0x60] sm:$0xff]
        %v600 = vld [vmem:[%s374 + $0x68] sm:$0xff]
        %v601 = vld [vmem:[%s374 + $0x70] sm:$0xff]
        %v602 = vld [vmem:[%s374 + $0x78] sm:$0xff]
        %603 = vxpose.xlu0.b32.start [1/16] %v555, 128
        %604 = vxpose.xlu0.b32.cont [2/16] %v556, 128
        %605 = vxpose.xlu0.b32.cont [3/16] %v557, 128
        %606 = vxpose.xlu0.b32.cont [4/16] %v558, 128
        %607 = vxpose.xlu0.b32.cont [5/16] %v559, 128
        %608 = vxpose.xlu0.b32.cont [6/16] %v560, 128
        %609 = vxpose.xlu0.b32.cont [7/16] %v561, 128
        %610 = vxpose.xlu0.b32.cont [8/16] %v562, 128
        %611 = vxpose.xlu0.b32.cont [9/16] %v563, 128
        %612 = vxpose.xlu0.b32.cont [10/16] %v564, 128
        %613 = vxpose.xlu0.b32.cont [11/16] %v565, 128
        %614 = vxpose.xlu0.b32.cont [12/16] %v566, 128
        %615 = vxpose.xlu0.b32.cont [13/16] %v567, 128
        %616 = vxpose.xlu0.b32.cont [14/16] %v568, 128
        %617 = vxpose.xlu0.b32.cont [15/16] %v569, 128
        %618 = vxpose.xlu0.b32.end [16/16] %v570, 128
        %v619 = vpop.trf.xlu0
        %v620 = vpop.trf.xlu0
        %v621 = vpop.trf.xlu0
        %v622 = vpop.trf.xlu0
        %v623 = vpop.trf.xlu0
        %v624 = vpop.trf.xlu0
        %v625 = vpop.trf.xlu0
        %v626 = vpop.trf.xlu0
        %v627 = vpop.trf.xlu0
        %v628 = vpop.trf.xlu0
        %v629 = vpop.trf.xlu0
        %v630 = vpop.trf.xlu0
        %v631 = vpop.trf.xlu0
        %v632 = vpop.trf.xlu0
        %v633 = vpop.trf.xlu0
        %v634 = vpop.trf.xlu0
        %635 = vmatprep.subr.mxu0 0.0
        %636 = vmatpush1.msra.mxu0 %v602
        %637 = vmatprep.subr.mxu0 0.0
        %638 = vmatpush1.msra.mxu0 %v601
        %639 = vmatprep.subr.mxu0 0.0
        %640 = vmatpush1.msra.mxu0 %v600
        %641 = vmatprep.subr.mxu0 0.0
        %642 = vmatpush1.msra.mxu0 %v599
        %643 = vmatprep.subr.mxu0 0.0
        %644 = vmatpush1.msra.mxu0 %v598
        %645 = vmatprep.subr.mxu0 0.0
        %646 = vmatpush1.msra.mxu0 %v597
        %647 = vmatprep.subr.mxu0 0.0
        %648 = vmatpush1.msra.mxu0 %v596
        %649 = vmatprep.subr.mxu0 0.0
        %650 = vmatpush1.msra.mxu0 %v595
        %651 = vmatprep.subr.mxu0 0.0
        %652 = vmatpush1.msra.mxu0 %v594
        %653 = vmatprep.subr.mxu0 0.0
        %654 = vmatpush1.msra.mxu0 %v593
        %655 = vmatprep.subr.mxu0 0.0
        %656 = vmatpush1.msra.mxu0 %v592
        %657 = vmatprep.subr.mxu0 0.0
        %658 = vmatpush1.msra.mxu0 %v591
        %659 = vmatprep.subr.mxu0 0.0
        %660 = vmatpush1.msra.mxu0 %v590
        %661 = vmatprep.subr.mxu0 0.0
        %662 = vmatpush1.msra.mxu0 %v589
        %663 = vmatprep.subr.mxu0 0.0
        %664 = vmatpush1.msra.mxu0 %v588
        %665 = vmatprep.subr.mxu0 0.0
        %666 = vmatpush1.msra.mxu0 %v587
        %667 = vmatprep.subr.mxu0 0.0
        %668 = vmatpush2.msra.mxu0 0.0
        %669 = vmatprep.subr.mxu0 0.0
        %670 = vmatpush2.msra.mxu0 0.0
        %671 = vmatprep.subr.mxu0 0.0
        %672 = vmatpush2.msra.mxu0 0.0
        %673 = vmatprep.subr.mxu0 0.0
        %674 = vmatpush2.msra.mxu0 0.0
        %675 = vmatprep.subr.mxu0 0.0
        %676 = vmatpush2.msra.mxu0 0.0
        %677 = vmatprep.subr.mxu0 0.0
        %678 = vmatpush2.msra.mxu0 0.0
        %679 = vmatprep.subr.mxu0 0.0
        %680 = vmatpush2.msra.mxu0 0.0
        %681 = vmatprep.subr.mxu0 0.0
        %682 = vmatpush2.msra.mxu0 0.0
        %683 = vmatprep.subr.mxu0 0.0
        %684 = vmatpush2.msra.mxu0 0.0
        %685 = vmatprep.subr.mxu0 0.0
        %686 = vmatpush2.msra.mxu0 0.0
        %687 = vmatprep.subr.mxu0 0.0
        %688 = vmatpush2.msra.mxu0 0.0
        %689 = vmatprep.subr.mxu0 0.0
        %690 = vmatpush2.msra.mxu0 0.0
        %691 = vmatprep.subr.mxu0 0.0
        %692 = vmatpush2.msra.mxu0 0.0
        %693 = vmatprep.subr.mxu0 0.0
        %694 = vmatpush2.msra.mxu0 0.0
        %695 = vmatprep.subr.mxu0 0.0
        %696 = vmatpush2.msra.mxu0 0.0
        %697 = vmatprep.subr.mxu0 0.0
        %698 = vmatpush2.msra.mxu0 0.0
        %699 = vmatprep.mubr.f32.mxu0 0.0
        %700 = vmatmul.mubr.f32.gmra.mxu0 %v619
        %v701 = vpop.f32.mrf.mxu0
        %v702 = vadd.f32 0.0, %v701
        %v703 = vpop.f32.mrf.mxu0
        %704 = vmatprep.mubr.f32.mxu0 0.0
        %705 = vmatmul.mubr.f32.gmra.mxu0 %v620
        %v706 = vpop.f32.mrf.mxu0
        %v707 = vadd.f32 0.0, %v706
        %v708 = vpop.f32.mrf.mxu0
        %709 = vmatprep.mubr.f32.mxu0 0.0
        %710 = vmatmul.mubr.f32.gmra.mxu0 %v621
        %v711 = vpop.f32.mrf.mxu0
        %v712 = vadd.f32 0.0, %v711
        %v713 = vpop.f32.mrf.mxu0
        %714 = vmatprep.mubr.f32.mxu0 0.0
        %715 = vmatmul.mubr.f32.gmra.mxu0 %v622
        %v716 = vpop.f32.mrf.mxu0
        %v717 = vadd.f32 0.0, %v716
        %v718 = vpop.f32.mrf.mxu0
        %719 = vmatprep.mubr.f32.mxu0 0.0
        %720 = vmatmul.mubr.f32.gmra.mxu0 %v623
        %v721 = vpop.f32.mrf.mxu0
        %v722 = vadd.f32 0.0, %v721
        %v723 = vpop.f32.mrf.mxu0
        %724 = vmatprep.mubr.f32.mxu0 0.0
        %725 = vmatmul.mubr.f32.gmra.mxu0 %v624
        %v726 = vpop.f32.mrf.mxu0
        %v727 = vadd.f32 0.0, %v726
        %v728 = vpop.f32.mrf.mxu0
        %729 = vmatprep.mubr.f32.mxu0 0.0
        %730 = vmatmul.mubr.f32.gmra.mxu0 %v625
        %v731 = vpop.f32.mrf.mxu0
        %v732 = vadd.f32 0.0, %v731
        %v733 = vpop.f32.mrf.mxu0
        %734 = vmatprep.mubr.f32.mxu0 0.0
        %735 = vmatmul.mubr.f32.gmra.mxu0 %v626
        %v736 = vpop.f32.mrf.mxu0
        %v737 = vadd.f32 0.0, %v736
        %v738 = vpop.f32.mrf.mxu0
        %739 = vmatprep.mubr.f32.mxu0 0.0
        %740 = vmatmul.mubr.f32.gmra.mxu0 %v627
        %v741 = vpop.f32.mrf.mxu0
        %v742 = vadd.f32 0.0, %v741
        %v743 = vpop.f32.mrf.mxu0
        %744 = vmatprep.mubr.f32.mxu0 0.0
        %745 = vmatmul.mubr.f32.gmra.mxu0 %v628
        %v746 = vpop.f32.mrf.mxu0
        %v747 = vadd.f32 0.0, %v746
        %v748 = vpop.f32.mrf.mxu0
        %749 = vmatprep.mubr.f32.mxu0 0.0
        %750 = vmatmul.mubr.f32.gmra.mxu0 %v629
        %v751 = vpop.f32.mrf.mxu0
        %v752 = vadd.f32 0.0, %v751
        %v753 = vpop.f32.mrf.mxu0
        %754 = vmatprep.mubr.f32.mxu0 0.0
        %755 = vmatmul.mubr.f32.gmra.mxu0 %v630
        %v756 = vpop.f32.mrf.mxu0
        %v757 = vadd.f32 0.0, %v756
        %v758 = vpop.f32.mrf.mxu0
        %759 = vmatprep.mubr.f32.mxu0 0.0
        %760 = vmatmul.mubr.f32.gmra.mxu0 %v631
        %v761 = vpop.f32.mrf.mxu0
        %v762 = vadd.f32 0.0, %v761
        %v763 = vpop.f32.mrf.mxu0
        %764 = vmatprep.mubr.f32.mxu0 0.0
        %765 = vmatmul.mubr.f32.gmra.mxu0 %v632
        %v766 = vpop.f32.mrf.mxu0
        %v767 = vadd.f32 0.0, %v766
        %v768 = vpop.f32.mrf.mxu0
        %769 = vmatprep.mubr.f32.mxu0 0.0
        %770 = vmatmul.mubr.f32.gmra.mxu0 %v633
        %v771 = vpop.f32.mrf.mxu0
        %v772 = vadd.f32 0.0, %v771
        %v773 = vpop.f32.mrf.mxu0
        %774 = vmatprep.mubr.f32.mxu0 0.0
        %775 = vmatmul.mubr.f32.gmra.mxu0 %v634
        %v776 = vpop.f32.mrf.mxu0
        %v777 = vadd.f32 0.0, %v776
        %v778 = vpop.f32.mrf.mxu0
        %779 = vdwg.mxu0
        %v780 = vadd.f32 %v571, %v702
        %v781 = vadd.f32 %v572, %v707
        %v782 = vadd.f32 %v573, %v712
        %v783 = vadd.f32 %v574, %v717
        %v784 = vadd.f32 %v575, %v722
        %v785 = vadd.f32 %v576, %v727
        %v786 = vadd.f32 %v577, %v732
        %v787 = vadd.f32 %v578, %v737
        %v788 = vadd.f32 %v579, %v742
        %v789 = vadd.f32 %v580, %v747
        %v790 = vadd.f32 %v581, %v752
        %v791 = vadd.f32 %v582, %v757
        %v792 = vadd.f32 %v583, %v762
        %v793 = vadd.f32 %v584, %v767
        %v794 = vadd.f32 %v585, %v772
        %v795 = vadd.f32 %v586, %v777
        %796 = vst [vmem:[#allocation2] sm:$0xff] %v780
        %797 = vst [vmem:[#allocation2 + $0x8] sm:$0xff] %v781
        %798 = vst [vmem:[#allocation2 + $0x10] sm:$0xff] %v782
        %799 = vst [vmem:[#allocation2 + $0x18] sm:$0xff] %v783
        %800 = vst [vmem:[#allocation2 + $0x20] sm:$0xff] %v784
        %801 = vst [vmem:[#allocation2 + $0x28] sm:$0xff] %v785
        %802 = vst [vmem:[#allocation2 + $0x30] sm:$0xff] %v786
        %803 = vst [vmem:[#allocation2 + $0x38] sm:$0xff] %v787
        %804 = vst [vmem:[#allocation2 + $0x40] sm:$0xff] %v788
        %805 = vst [vmem:[#allocation2 + $0x48] sm:$0xff] %v789
        %806 = vst [vmem:[#allocation2 + $0x50] sm:$0xff] %v790
        %807 = vst [vmem:[#allocation2 + $0x58] sm:$0xff] %v791
        %808 = vst [vmem:[#allocation2 + $0x60] sm:$0xff] %v792
        %809 = vst [vmem:[#allocation2 + $0x68] sm:$0xff] %v793
        %810 = vst [vmem:[#allocation2 + $0x70] sm:$0xff] %v794
        %811 = vst [vmem:[#allocation2 + $0x78] sm:$0xff] %v795
        %p812 = scmp.eq.s32.totalorder %s28, 1
        // Predicated region
        $region94: #{tpu_custom_call.1} parent=76 // pred_check
          %p813 = pneg %p812
        $region95: #{tpu_custom_call.1} parent=76 // pred_check_branch
          %815 = sbr.rel (%p813) target = $region97
        $region96: #{tpu_custom_call.1} parent=76 // pred_region
          %v816 = vld [vmem:[#allocation2] sm:$0xff]
          %v817 = vld [vmem:[#allocation2 + $0x8] sm:$0xff]
          %v818 = vld [vmem:[#allocation2 + $0x10] sm:$0xff]
          %v819 = vld [vmem:[#allocation2 + $0x18] sm:$0xff]
          %v820 = vld [vmem:[#allocation2 + $0x20] sm:$0xff]
          %v821 = vld [vmem:[#allocation2 + $0x28] sm:$0xff]
          %v822 = vld [vmem:[#allocation2 + $0x30] sm:$0xff]
          %v823 = vld [vmem:[#allocation2 + $0x38] sm:$0xff]
          %v824 = vld [vmem:[#allocation2 + $0x40] sm:$0xff]
          %v825 = vld [vmem:[#allocation2 + $0x48] sm:$0xff]
          %v826 = vld [vmem:[#allocation2 + $0x50] sm:$0xff]
          %v827 = vld [vmem:[#allocation2 + $0x58] sm:$0xff]
          %v828 = vld [vmem:[#allocation2 + $0x60] sm:$0xff]
          %v829 = vld [vmem:[#allocation2 + $0x68] sm:$0xff]
          %v830 = vld [vmem:[#allocation2 + $0x70] sm:$0xff]
          %v831 = vld [vmem:[#allocation2 + $0x78] sm:$0xff]
          %v832 = vld [vmem:[#allocation7] sm:$0xff]
          %v833 = vld [vmem:[#allocation7 + $0x8] sm:$0xff]
          %v834 = vld [vmem:[#allocation7 + $0x10] sm:$0xff]
          %v835 = vld [vmem:[#allocation7 + $0x18] sm:$0xff]
          %v836 = vld [vmem:[#allocation7 + $0x20] sm:$0xff]
          %v837 = vld [vmem:[#allocation7 + $0x28] sm:$0xff]
          %v838 = vld [vmem:[#allocation7 + $0x30] sm:$0xff]
          %v839 = vld [vmem:[#allocation7 + $0x38] sm:$0xff]
          %v840 = vld [vmem:[#allocation7 + $0x40] sm:$0xff]
          %v841 = vld [vmem:[#allocation7 + $0x48] sm:$0xff]
          %v842 = vld [vmem:[#allocation7 + $0x50] sm:$0xff]
          %v843 = vld [vmem:[#allocation7 + $0x58] sm:$0xff]
          %v844 = vld [vmem:[#allocation7 + $0x60] sm:$0xff]
          %v845 = vld [vmem:[#allocation7 + $0x68] sm:$0xff]
          %v846 = vld [vmem:[#allocation7 + $0x70] sm:$0xff]
          %v847 = vld [vmem:[#allocation7 + $0x78] sm:$0xff]
          %v848 = vld [vmem:[%s4] sm:$0x1]
          %v850 = vlaneseq
          %v851 = vshrl.u32 %v850, 7
          %v852 = vsub.s32 0, %v851
          %v853 = vrot.slane %v848, %v852
          %855 = vmatprep.subr.mxu0 0.0
          %856 = vmatpush1.msra.mxu0 %v847
          %857 = vmatprep.subr.mxu0 0.0
          %858 = vmatpush1.msra.mxu0 %v846
          %859 = vmatprep.subr.mxu0 0.0
          %860 = vmatpush1.msra.mxu0 %v845
          %861 = vmatprep.subr.mxu0 0.0
          %862 = vmatpush1.msra.mxu0 %v844
          %863 = vmatprep.subr.mxu0 0.0
          %864 = vmatpush1.msra.mxu0 %v843
          %865 = vmatprep.subr.mxu0 0.0
          %866 = vmatpush1.msra.mxu0 %v842
          %867 = vmatprep.subr.mxu0 0.0
          %868 = vmatpush1.msra.mxu0 %v841
          %869 = vmatprep.subr.mxu0 0.0
          %870 = vmatpush1.msra.mxu0 %v840
          %871 = vmatprep.subr.mxu0 0.0
          %872 = vmatpush1.msra.mxu0 %v839
          %873 = vmatprep.subr.mxu0 0.0
          %874 = vmatpush1.msra.mxu0 %v838
          %875 = vmatprep.subr.mxu0 0.0
          %876 = vmatpush1.msra.mxu0 %v837
          %877 = vmatprep.subr.mxu0 0.0
          %878 = vmatpush1.msra.mxu0 %v836
          %879 = vmatprep.subr.mxu0 0.0
          %880 = vmatpush1.msra.mxu0 %v835
          %881 = vmatprep.subr.mxu0 0.0
          %882 = vmatpush1.msra.mxu0 %v834
          %883 = vmatprep.subr.mxu0 0.0
          %884 = vmatpush1.msra.mxu0 %v833
          %885 = vmatprep.subr.mxu0 0.0
          %886 = vmatpush1.msra.mxu0 %v832
          %887 = vmatprep.subr.mxu0 0.0
          %888 = vmatpush2.msra.mxu0 0.0
          %889 = vmatprep.subr.mxu0 0.0
          %890 = vmatpush2.msra.mxu0 0.0
          %891 = vmatprep.subr.mxu0 0.0
          %892 = vmatpush2.msra.mxu0 0.0
          %893 = vmatprep.subr.mxu0 0.0
          %894 = vmatpush2.msra.mxu0 0.0
          %895 = vmatprep.subr.mxu0 0.0
          %896 = vmatpush2.msra.mxu0 0.0
          %897 = vmatprep.subr.mxu0 0.0
          %898 = vmatpush2.msra.mxu0 0.0
          %899 = vmatprep.subr.mxu0 0.0
          %900 = vmatpush2.msra.mxu0 0.0
          %901 = vmatprep.subr.mxu0 0.0
          %902 = vmatpush2.msra.mxu0 0.0
          %903 = vmatprep.subr.mxu0 0.0
          %904 = vmatpush2.msra.mxu0 0.0
          %905 = vmatprep.subr.mxu0 0.0
          %906 = vmatpush2.msra.mxu0 0.0
          %907 = vmatprep.subr.mxu0 0.0
          %908 = vmatpush2.msra.mxu0 0.0
          %909 = vmatprep.subr.mxu0 0.0
          %910 = vmatpush2.msra.mxu0 0.0
          %911 = vmatprep.subr.mxu0 0.0
          %912 = vmatpush2.msra.mxu0 0.0
          %913 = vmatprep.subr.mxu0 0.0
          %914 = vmatpush2.msra.mxu0 0.0
          %915 = vmatprep.subr.mxu0 0.0
          %916 = vmatpush2.msra.mxu0 0.0
          %917 = vmatprep.subr.mxu0 0.0
          %918 = vmatpush2.msra.mxu0 0.0
          %919 = vmatprep.mubr.f32.mxu0 0.0
          %920 = vmatmul.mubr.f32.gmra.mxu0 %v816
          %v921 = vpop.f32.mrf.mxu0
          %v922 = vadd.f32 %v853, %v921
          %v923 = vpop.f32.mrf.mxu0
          %924 = vmatprep.mubr.f32.mxu0 0.0
          %925 = vmatmul.mubr.f32.gmra.mxu0 %v817
          %v926 = vpop.f32.mrf.mxu0
          %v927 = vadd.f32 %v853, %v926
          %v928 = vpop.f32.mrf.mxu0
          %929 = vmatprep.mubr.f32.mxu0 0.0
          %930 = vmatmul.mubr.f32.gmra.mxu0 %v818
          %v931 = vpop.f32.mrf.mxu0
          %v932 = vadd.f32 %v853, %v931
          %v933 = vpop.f32.mrf.mxu0
          %934 = vmatprep.mubr.f32.mxu0 0.0
          %935 = vmatmul.mubr.f32.gmra.mxu0 %v819
          %v936 = vpop.f32.mrf.mxu0
          %v937 = vadd.f32 %v853, %v936
          %v938 = vpop.f32.mrf.mxu0
          %939 = vmatprep.mubr.f32.mxu0 0.0
          %940 = vmatmul.mubr.f32.gmra.mxu0 %v820
          %v941 = vpop.f32.mrf.mxu0
          %v942 = vadd.f32 %v853, %v941
          %v943 = vpop.f32.mrf.mxu0
          %944 = vmatprep.mubr.f32.mxu0 0.0
          %945 = vmatmul.mubr.f32.gmra.mxu0 %v821
          %v946 = vpop.f32.mrf.mxu0
          %v947 = vadd.f32 %v853, %v946
          %v948 = vpop.f32.mrf.mxu0
          %949 = vmatprep.mubr.f32.mxu0 0.0
          %950 = vmatmul.mubr.f32.gmra.mxu0 %v822
          %v951 = vpop.f32.mrf.mxu0
          %v952 = vadd.f32 %v853, %v951
          %v953 = vpop.f32.mrf.mxu0
          %954 = vmatprep.mubr.f32.mxu0 0.0
          %955 = vmatmul.mubr.f32.gmra.mxu0 %v823
          %v956 = vpop.f32.mrf.mxu0
          %v957 = vadd.f32 %v853, %v956
          %v958 = vpop.f32.mrf.mxu0
          %959 = vmatprep.mubr.f32.mxu0 0.0
          %960 = vmatmul.mubr.f32.gmra.mxu0 %v824
          %v961 = vpop.f32.mrf.mxu0
          %v962 = vadd.f32 %v853, %v961
          %v963 = vpop.f32.mrf.mxu0
          %964 = vmatprep.mubr.f32.mxu0 0.0
          %965 = vmatmul.mubr.f32.gmra.mxu0 %v825
          %v966 = vpop.f32.mrf.mxu0
          %v967 = vadd.f32 %v853, %v966
          %v968 = vpop.f32.mrf.mxu0
          %969 = vmatprep.mubr.f32.mxu0 0.0
          %970 = vmatmul.mubr.f32.gmra.mxu0 %v826
          %v971 = vpop.f32.mrf.mxu0
          %v972 = vadd.f32 %v853, %v971
          %v973 = vpop.f32.mrf.mxu0
          %974 = vmatprep.mubr.f32.mxu0 0.0
          %975 = vmatmul.mubr.f32.gmra.mxu0 %v827
          %v976 = vpop.f32.mrf.mxu0
          %v977 = vadd.f32 %v853, %v976
          %v978 = vpop.f32.mrf.mxu0
          %979 = vmatprep.mubr.f32.mxu0 0.0
          %980 = vmatmul.mubr.f32.gmra.mxu0 %v828
          %v981 = vpop.f32.mrf.mxu0
          %v982 = vadd.f32 %v853, %v981
          %v983 = vpop.f32.mrf.mxu0
          %984 = vmatprep.mubr.f32.mxu0 0.0
          %985 = vmatmul.mubr.f32.gmra.mxu0 %v829
          %v986 = vpop.f32.mrf.mxu0
          %v987 = vadd.f32 %v853, %v986
          %v988 = vpop.f32.mrf.mxu0
          %989 = vmatprep.mubr.f32.mxu0 0.0
          %990 = vmatmul.mubr.f32.gmra.mxu0 %v830
          %v991 = vpop.f32.mrf.mxu0
          %v992 = vadd.f32 %v853, %v991
          %v993 = vpop.f32.mrf.mxu0
          %994 = vmatprep.mubr.f32.mxu0 0.0
          %995 = vmatmul.mubr.f32.gmra.mxu0 %v831
          %v996 = vpop.f32.mrf.mxu0
          %v997 = vadd.f32 %v853, %v996
          %v998 = vpop.f32.mrf.mxu0
          %999 = vdwg.mxu0
          %v1000 = vmax.f32 %v922, 0.0
          %v1001 = vmax.f32 %v927, 0.0
          %v1002 = vmax.f32 %v932, 0.0
          %v1003 = vmax.f32 %v937, 0.0
          %v1004 = vmax.f32 %v942, 0.0
          %v1005 = vmax.f32 %v947, 0.0
          %v1006 = vmax.f32 %v952, 0.0
          %v1007 = vmax.f32 %v957, 0.0
          %v1008 = vmax.f32 %v962, 0.0
          %v1009 = vmax.f32 %v967, 0.0
          %v1010 = vmax.f32 %v972, 0.0
          %v1011 = vmax.f32 %v977, 0.0
          %v1012 = vmax.f32 %v982, 0.0
          %v1013 = vmax.f32 %v987, 0.0
          %v1014 = vmax.f32 %v992, 0.0
          %v1015 = vmax.f32 %v997, 0.0
          %1016 = vst [vmem:[%s413] sm:$0xff] %v1000
          %1017 = vst [vmem:[%s413 + $0x8] sm:$0xff] %v1001
          %1018 = vst [vmem:[%s413 + $0x10] sm:$0xff] %v1002
          %1019 = vst [vmem:[%s413 + $0x18] sm:$0xff] %v1003
          %1020 = vst [vmem:[%s413 + $0x20] sm:$0xff] %v1004
          %1021 = vst [vmem:[%s413 + $0x28] sm:$0xff] %v1005
          %1022 = vst [vmem:[%s413 + $0x30] sm:$0xff] %v1006
          %1023 = vst [vmem:[%s413 + $0x38] sm:$0xff] %v1007
          %1024 = vst [vmem:[%s413 + $0x40] sm:$0xff] %v1008
          %1025 = vst [vmem:[%s413 + $0x48] sm:$0xff] %v1009
          %1026 = vst [vmem:[%s413 + $0x50] sm:$0xff] %v1010
          %1027 = vst [vmem:[%s413 + $0x58] sm:$0xff] %v1011
          %1028 = vst [vmem:[%s413 + $0x60] sm:$0xff] %v1012
          %1029 = vst [vmem:[%s413 + $0x68] sm:$0xff] %v1013
          %1030 = vst [vmem:[%s413 + $0x70] sm:$0xff] %v1014
          %1031 = vst [vmem:[%s413 + $0x78] sm:$0xff] %v1015
        $region97: #{tpu_custom_call.1} parent=76 // pred_fallthru
          _
        %s1032 = sand.u32 %s165, 1
        %s1033 = scalar_lea.sflag [#allocation6], %s1032
        %s1034 = sand.u32 %s165, 1
        %s1035 = smul.addr %s1034, 128
        %s1036 = scalar_lea.vmem [#allocation9], %s1035
        // Predicated region
        $region98: #{tpu_custom_call.1} parent=76 // pred_check
          %p1037 = pneg %p175
        $region99: #{tpu_custom_call.1} parent=76 // pred_check_branch
          %1039 = sbr.rel (%p1037) target = $region101
        $region100: #{tpu_custom_call.1} parent=76 // pred_region
          %s1040 = smul.u32 16, %s27
          %s1042 = ssub.s32 2048, 2048
          %1043 = vsyncadd %s1033, %s1042
          %s1044 = smul.addr %s1040, 128
          %s1045 = scalar_lea.hbm %s5, %s1044
          %s1046 = sshll.u32 %s1036, 4
          %s1047 = int_to_ptr.vmem [resolvable:$true] %s1046
          %1052 = dma.vmem_to_hbm [thread:$0]  %s1047, 2048, %s1045, %s1033, 128, 128, 8
        $region101: #{tpu_custom_call.1} parent=76 // pred_fallthru
          _
      $region77: #{tpu_custom_call.1} parent=5 // pred_fallthru
        _
      %p1053 = scmp.le.s32.totalorder 2, %s18
      // Predicated region
      $region102: #{tpu_custom_call.1} parent=5 // pred_check
        %p1054 = pneg %p1053
      $region103: #{tpu_custom_call.1} parent=5 // pred_check_branch
        %1056 = sbr.rel (%p1054) target = $region105
      $region104: #{tpu_custom_call.1} parent=5 // pred_region
        %s1057 = ssub.s32 %s18, 2
        // Predicated region
        $region106: #{tpu_custom_call.1} parent=104 // pred_check
          %p1058 = pneg %p181
        $region107: #{tpu_custom_call.1} parent=104 // pred_check_branch
          %1060 = sbr.rel (%p1058) target = $region109
        $region108: #{tpu_custom_call.1} parent=104 // pred_region
          %s1061 = sand.u32 %s166, 1
          %s1062 = scalar_lea.sflag [#allocation6], %s1061
          %s1063 = sand.u32 %s166, 1
          %s1064 = smul.addr %s1063, 128
          %s1065 = scalar_lea.vmem [#allocation9], %s1064
          %1066 = dma.done %s1062, 2048
        $region109: #{tpu_custom_call.1} parent=104 // pred_fallthru
          _
      $region105: #{tpu_custom_call.1} parent=5 // pred_fallthru
        _
    $region6: #{tpu_custom_call.1} parent=1 // loop_footer
      %s22 = sadd.s32 1, %s18
    $region7: #{tpu_custom_call.1} parent=1 // loop_footer_branch
      %17 = sbr.rel target = $region3
    $region8: #{tpu_custom_call.1} parent=1 // loop_exit
      _
    %1067 = vsyncpa [#allocation5], 1
    %s1068 = scalar_lea.sflag [#allocation5], 1
    %1069 = vsyncpa %s1068, 1
    %1070 = vsyncpa [#allocation8], 1
    %1071 = vsyncpa [#allocation6], 1
    %s1072 = scalar_lea.sflag [#allocation6], 1
    %1073 = vsyncpa %s1072, 1

</llo_original>
